<compile_context>
chip_gen: v7x
topology: tpu7x:2x2x1
jax: 0.10.0
libtpu: 0.0.40
codegen_flags: <defaults>
</compile_context>

<pallas_src>
import functools

import jax
import jax.numpy as jnp
from jax.experimental import pallas as pl
from jax.experimental.pallas import tpu as pltpu


def _round_up(x, m):
    return ((x + m - 1) // m) * m


def _pick_time_block(T, cap=8):
    """Largest divisor of T that is <= cap (keeps the unrolled body small)."""
    for tb in range(min(T, cap), 0, -1):
        if T % tb == 0:
            return tb
    return 1


def _rollout_kernel(x_ref, h0_ref, c0_ref,
                    wpre_ref, wgates_ref, wpost_ref,
                    out_ref, xh_sc, c_sc,
                    *, pre_size, hidden, out_feat, pack, t_block):
    """TB DISTANA timesteps per grid iteration; (h, c) carried in VMEM scratch.

    xh_sc : (P, pre_size + H) f32 scratch. Lanes [pre_size:] hold the persistent
            hidden state h; lanes [:pre_size] are overwritten with pre_act each
            step, so the fused gate matmul reads [pre_act | h] directly.
    c_sc  : (P, H) f32 scratch holding the persistent cell state.
    """
    H = hidden
    P = c_sc.shape[0]

    # First grid step: load initial recurrent state into VMEM scratch.  It then
    # never round-trips through HBM between timesteps.
    @pl.when(pl.program_id(0) == 0)
    def _():
        xh_sc[:, pre_size:] = h0_ref[...]
        c_sc[...] = c0_ref[...]

    # Weights are VMEM-resident (constant index_maps); load once per grid step.
    w_pre = wpre_ref[...]                    # (in_feat, pre)        f32
    w_gates = wgates_ref[...]                # (pre + H, 4H)         bf16
    w_post = wpost_ref[...]                  # (H, out_feat)         bf16
    mm_dtype = w_gates.dtype

    pad = pack - (out_feat + 2 * H)
    zeros_pad = jnp.zeros((P, pad), jnp.float32) if pad > 0 else None

    # Fully-unrolled inner time loop: t_block is a small static Python int, so
    # every ref index below stays static and the LLO scheduler can overlap the
    # epilogue of step t with the prologue of step t+1.
    for tt in range(t_block):
        # ---- pre layer: pre_act = tanh(x @ W_pre), x = [dyn | lat] (f32) ----
        x = x_ref[tt]                                          # (P, in_feat)
        pre_act = jnp.tanh(jnp.dot(x, w_pre,
                                   preferred_element_type=jnp.float32))
        xh_sc[:, :pre_size] = pre_act                          # assemble [pre|h]

        c_prev = c_sc[...]

        # ---- LSTM cell (bias-free): single fused gate matmul -----------------
        # w_gates = [[W_ih]; [W_hh]] (bf16), gate columns reordered to [i|f|o|g].
        gates = jnp.dot(xh_sc[...].astype(mm_dtype), w_gates,
                        preferred_element_type=jnp.float32)    # (P, 4H) f32

        sig = jax.nn.sigmoid(gates[:, :3 * H])                 # i | f | o lanes
        g_g = jnp.tanh(gates[:, 3 * H:])                       # g lanes
        i_g = sig[:, 0 * H:1 * H]
        f_g = sig[:, 1 * H:2 * H]
        o_g = sig[:, 2 * H:3 * H]

        c_new = f_g * c_prev + i_g * g_g                       # f32 state
        h_new = o_g * jnp.tanh(c_new)

        # ---- post layer ------------------------------------------------------
        post = jnp.tanh(jnp.dot(h_new.astype(mm_dtype), w_post,
                                preferred_element_type=jnp.float32))

        # carry state to the next timestep (VMEM only)
        xh_sc[:, pre_size:] = h_new
        c_sc[...] = c_new

        # ---- lane-dense packed output row: [post | h | c | zero-pad] ---------
        out_ref[tt, :, 0:out_feat] = post
        out_ref[tt, :, out_feat:out_feat + H] = h_new
        out_ref[tt, :, out_feat + H:out_feat + 2 * H] = c_new
        if pad > 0:
            out_ref[tt, :, out_feat + 2 * H:] = zeros_pad


class PredictionKernelNetPallas:
    def __init__(self, *, amount_pks, pk_dyn_in_size, pk_lat_in_size,
                 pk_neighbors, pk_pre_layer_size, pk_num_lstm_cells,
                 pk_dyn_out_size, pk_lat_out_size, key):
        self.P = amount_pks
        self.dyn_in = pk_dyn_in_size
        self.lat_in = pk_lat_in_size
        self.nb = pk_neighbors
        self.pre = pk_pre_layer_size
        self.H = pk_num_lstm_cells
        self.dyn_out = pk_dyn_out_size
        self.lat_out = pk_lat_out_size

        self.in_feat = self.dyn_in + self.lat_in * self.nb
        self.out_feat = self.dyn_out + self.lat_out * self.nb
        # packed output lane width: [post | h | c] rounded up to lane-dense 128
        self.pack = _round_up(self.out_feat + 2 * self.H, 128)

        k1, k2, k3, k4 = jax.random.split(key, 4)

        def _lin(k, fan_in, fan_out):
            # matches nn.Linear / nn.LSTMCell default init scale, stored
            # transposed as (in, out) so the kernel computes plain x @ W.
            bound = 1.0 / jnp.sqrt(jnp.float32(fan_in))
            return jax.random.uniform(k, (fan_in, fan_out), jnp.float32,
                                      minval=-bound, maxval=bound)

        H = self.H
        # pre-layer weight stays f32 (tiny; keeps v5e-friendly f32 path)
        self.w_pre_t = _lin(k1, self.in_feat, self.pre)                 # (in, pre) f32
        # LSTM + post weights as bf16 MXU operands (f32 accumulation in-kernel)
        self.w_ih_t = _lin(k2, self.pre, 4 * H).astype(jnp.bfloat16)    # cols [i|f|g|o]
        self.w_hh_t = _lin(k3, H, 4 * H).astype(jnp.bfloat16)
        self.w_post_t = _lin(k4, H, self.out_feat).astype(jnp.bfloat16)

        def _reorder(w):   # gate columns [i|f|g|o] -> [i|f|o|g]
            i, f, g, o = w[:, :H], w[:, H:2 * H], w[:, 2 * H:3 * H], w[:, 3 * H:]
            return jnp.concatenate([i, f, o, g], axis=1)

        # fused, reordered gate weight for the kernel: (pre + H, 4H) bf16
        self.w_gates_t = jnp.concatenate(
            [_reorder(self.w_ih_t), _reorder(self.w_hh_t)], axis=0)

    # ---- pallas_call over the (blocked) time grid ----------------------------
    def _run(self, x_seq, h0, c0):
        T = x_seq.shape[0]
        P, H = self.P, self.H
        TB = _pick_time_block(T)
        kern = functools.partial(_rollout_kernel, pre_size=self.pre, hidden=H,
                                 out_feat=self.out_feat, pack=self.pack,
                                 t_block=TB)
        grid_spec = pltpu.PrefetchScalarGridSpec(
            num_scalar_prefetch=0,
            grid=(T // TB,),
            in_specs=[
                # TB timesteps of input per grid step
                pl.BlockSpec((TB, P, self.in_feat), lambda tb: (tb, 0, 0)),
                # initial state + all weights: constant block index -> DMA'd
                # once and VMEM-resident for the whole rollout
                pl.BlockSpec((P, H), lambda tb: (0, 0)),
                pl.BlockSpec((P, H), lambda tb: (0, 0)),
                pl.BlockSpec((self.in_feat, self.pre), lambda tb: (0, 0)),
                pl.BlockSpec((self.pre + H, 4 * H), lambda tb: (0, 0)),
                pl.BlockSpec((H, self.out_feat), lambda tb: (0, 0)),
            ],
            out_specs=pl.BlockSpec((TB, P, self.pack), lambda tb: (tb, 0, 0)),
            scratch_shapes=[
                pltpu.VMEM((P, self.pre + H), jnp.float32),   # [pre_act | h]
                pltpu.VMEM((P, H), jnp.float32),              # c
            ],
        )
        return pl.pallas_call(
            kern,
            grid_spec=grid_spec,
            out_shape=jax.ShapeDtypeStruct((T, P, self.pack), jnp.float32),
            compiler_params=pltpu.CompilerParams(
                dimension_semantics=("arbitrary",)),          # time recurrence
        )(x_seq, h0, c0, self.w_pre_t, self.w_gates_t, self.w_post_t)

    # ---- multi-step rollout (time loop folded into the kernel) --------------
    def rollout(self, dyn_seq, lat_seq, lstm_c, lstm_h):
        T = dyn_seq.shape[0]
        P, H, of = self.P, self.H, self.out_feat
        lat_flat = lat_seq.reshape(T, P, self.nb * self.lat_in)
        # one concat for the WHOLE sequence, outside the recurrence
        x_seq = jnp.concatenate([dyn_seq, lat_flat], axis=-1).astype(jnp.float32)
        packed = self._run(x_seq, lstm_h.astype(jnp.float32),
                           lstm_c.astype(jnp.float32))
        post = packed[:, :, :of]
        h_last = packed[-1, :, of:of + H]
        c_last = packed[-1, :, of + H:of + 2 * H]
        dyn_out = post[:, :, :self.dyn_out]
        lat_out = post[:, :, self.dyn_out:].reshape(T, P, self.nb, self.lat_out)
        return dyn_out, lat_out, c_last, h_last

    # ---- single step, matching the PyTorch module's forward signature -------
    def __call__(self, dyn_in, lat_in, stat_in=None, lstm_c=None, lstm_h=None):
        dyn_out, lat_out, c_new, h_new = self.rollout(
            dyn_in[None], lat_in[None], lstm_c, lstm_h)
        return dyn_out[0], lat_out[0], c_new, h_new


def _reference_step(net, dyn_in, lat_in, lstm_c, lstm_h):
    """Pure-JAX single step (PyTorch gate order, unfused), mirroring the bf16
    MXU-operand casts so tolerances stay tight."""
    P, H = net.P, net.H
    lat_flat = lat_in.reshape(P, net.nb * net.lat_in)
    x = jnp.concatenate([dyn_in, lat_flat], axis=1)
    pre = jnp.tanh(x @ net.w_pre_t)
    gates = (jnp.dot(pre.astype(jnp.bfloat16), net.w_ih_t,
                     preferred_element_type=jnp.float32)
             + jnp.dot(lstm_h.astype(jnp.bfloat16), net.w_hh_t,
                       preferred_element_type=jnp.float32))
    i = jax.nn.sigmoid(gates[:, :H])
    f = jax.nn.sigmoid(gates[:, H:2 * H])
    g = jnp.tanh(gates[:, 2 * H:3 * H])
    o = jax.nn.sigmoid(gates[:, 3 * H:])
    c_new = f * lstm_c + i * g
    h_new = o * jnp.tanh(c_new)
    post = jnp.tanh(jnp.dot(h_new.astype(jnp.bfloat16), net.w_post_t,
                            preferred_element_type=jnp.float32))
    dyn_out = post[:, :net.dyn_out]
    lat_out = post[:, net.dyn_out:].reshape(P, net.nb, net.lat_out)
    return dyn_out, lat_out, c_new, h_new


if __name__ == "__main__":
    # Small DISTANA-like configuration.
    P = 16           # amount_pks
    NB = 8           # pk_neighbors
    DYN_IN = 1       # pk_dyn_in_size
    LAT_IN = 1       # pk_lat_in_size
    PRE = 16         # pk_pre_layer_size
    H = 32           # pk_num_lstm_cells
    DYN_OUT = 1      # pk_dyn_out_size
    LAT_OUT = 1      # pk_lat_out_size
    T = 6            # rollout length for the multi-step test

    key = jax.random.PRNGKey(0)
    k_param, k_dyn, k_lat, k_c, k_h, k_ds, k_ls = jax.random.split(key, 7)

    net = PredictionKernelNetPallas(
        amount_pks=P, pk_dyn_in_size=DYN_IN, pk_lat_in_size=LAT_IN,
        pk_neighbors=NB, pk_pre_layer_size=PRE, pk_num_lstm_cells=H,
        pk_dyn_out_size=DYN_OUT, pk_lat_out_size=LAT_OUT, key=k_param)

    dyn_in = jax.random.normal(k_dyn, (P, DYN_IN), jnp.float32)
    lat_in = jax.random.normal(k_lat, (P, NB, LAT_IN), jnp.float32)
    lstm_c = jax.random.normal(k_c, (P, H), jnp.float32)
    lstm_h = jax.random.normal(k_h, (P, H), jnp.float32)

    atol = 2e-2   # bf16 MXU operands (kernel & reference both use them)

    # ---- single step (module forward semantics) -----------------------------
    dyn_out, lat_out, c_new, h_new = net(dyn_in, lat_in, None, lstm_c, lstm_h)
    jax.block_until_ready((dyn_out, lat_out, c_new, h_new))

    r_dyn, r_lat, r_c, r_h = _reference_step(net, dyn_in, lat_in, lstm_c, lstm_h)
    assert dyn_out.shape == (P, DYN_OUT)
    assert lat_out.shape == (P, NB, LAT_OUT)
    assert jnp.allclose(dyn_out, r_dyn, atol=atol)
    assert jnp.allclose(lat_out, r_lat, atol=atol)
    assert jnp.allclose(c_new, r_c, atol=atol)
    assert jnp.allclose(h_new, r_h, atol=atol)

    # ---- multi-step rollout (time loop folded into one pallas_call) ---------
    dyn_seq = jax.random.normal(k_ds, (T, P, DYN_IN), jnp.float32)
    lat_seq = jax.random.normal(k_ls, (T, P, NB, LAT_IN), jnp.float32)
    d_seq, l_seq, c_T, h_T = net.rollout(dyn_seq, lat_seq, lstm_c, lstm_h)
    jax.block_until_ready((d_seq, l_seq, c_T, h_T))

    rc, rh = lstm_c, lstm_h
    for t in range(T):
        rd, rl, rc, rh = _reference_step(net, dyn_seq[t], lat_seq[t], rc, rh)
        assert jnp.allclose(d_seq[t], rd, atol=atol)
        assert jnp.allclose(l_seq[t], rl, atol=atol)
    assert jnp.allclose(c_T, rc, atol=atol)
    assert jnp.allclose(h_T, rh, atol=atol)
    assert d_seq.shape == (T, P, DYN_OUT)
    assert l_seq.shape == (T, P, NB, LAT_OUT)

    print("KERNEL_OK")
</pallas_src>

<mosaic_0001>
module attributes {stable_mosaic.version = 11 : i64} {
  func.func @_rollout_kernel(%arg0: i32, %arg1: memref<1x16x9xf32, #tpu.memory_space<vmem>>, %arg2: memref<16x32xf32, #tpu.memory_space<vmem>>, %arg3: memref<16x32xf32, #tpu.memory_space<vmem>>, %arg4: memref<9x16xf32, #tpu.memory_space<vmem>>, %arg5: memref<48x128xbf16, #tpu.memory_space<vmem>>, %arg6: memref<32x9xbf16, #tpu.memory_space<vmem>>, %arg7: memref<1x16x128xf32, #tpu.memory_space<vmem>>, %arg8: memref<16x48xf32, #tpu.memory_space<vmem>>, %arg9: memref<16x32xf32, #tpu.memory_space<vmem>>) attributes {dimension_semantics = [#tpu.dimension_semantics<arbitrary>], iteration_bounds = array<i64: 1>, scalar_prefetch = 0 : i64, scratch_operands = 2 : i64, tpu.core_type = #tpu.core_type<tc>, window_params = [{transform_indices = @transform_0, window_bounds = array<i64: 1, 16, 9>}, {pipeline_mode = #tpu.pipeline_mode<synchronous>, transform_indices = @transform_1, window_bounds = array<i64: 16, 32>}, {pipeline_mode = #tpu.pipeline_mode<synchronous>, transform_indices = @transform_2, window_bounds = array<i64: 16, 32>}, {pipeline_mode = #tpu.pipeline_mode<synchronous>, transform_indices = @transform_3, window_bounds = array<i64: 9, 16>}, {pipeline_mode = #tpu.pipeline_mode<synchronous>, transform_indices = @transform_4, window_bounds = array<i64: 48, 128>}, {pipeline_mode = #tpu.pipeline_mode<synchronous>, transform_indices = @transform_5, window_bounds = array<i64: 32, 9>}, {transform_indices = @transform_6, window_bounds = array<i64: 1, 16, 128>}]} {
    %c0_i32 = arith.constant 0 : i32
    %0 = arith.cmpi eq, %arg0, %c0_i32 : i32
    %1 = arith.extui %0 : i1 to i32
    %c0_i32_0 = arith.constant 0 : i32
    %2 = arith.cmpi ne, %1, %c0_i32_0 : i32
    scf.if %2 {
      %c0_31 = arith.constant 0 : index
      %c0_32 = arith.constant 0 : index
      %49 = vector.load %arg2[%c0_31, %c0_32] : memref<16x32xf32, #tpu.memory_space<vmem>>, vector<16x32xf32>
      %c0_33 = arith.constant 0 : index
      %c16_34 = arith.constant 16 : index
      %50 = vector.load %arg8[%c0_33, %c16_34] : memref<16x48xf32, #tpu.memory_space<vmem>>, vector<16x32xf32>
      tpu.vector_store %arg8[%c0_33, %c16_34], %49 {strides = array<i32>} : memref<16x48xf32, #tpu.memory_space<vmem>>, vector<16x32xf32>,
      %c0_35 = arith.constant 0 : index
      %c0_36 = arith.constant 0 : index
      %51 = vector.load %arg3[%c0_35, %c0_36] : memref<16x32xf32, #tpu.memory_space<vmem>>, vector<16x32xf32>
      %c0_37 = arith.constant 0 : index
      %c0_38 = arith.constant 0 : index
      %52 = vector.load %arg9[%c0_37, %c0_38] : memref<16x32xf32, #tpu.memory_space<vmem>>, vector<16x32xf32>
      tpu.vector_store %arg9[%c0_37, %c0_38], %51 {strides = array<i32>} : memref<16x32xf32, #tpu.memory_space<vmem>>, vector<16x32xf32>,
    } else {
    }
    %c0 = arith.constant 0 : index
    %c0_1 = arith.constant 0 : index
    %3 = vector.load %arg4[%c0, %c0_1] : memref<9x16xf32, #tpu.memory_space<vmem>>, vector<9x16xf32>
    %c0_2 = arith.constant 0 : index
    %c0_3 = arith.constant 0 : index
    %4 = vector.load %arg5[%c0_2, %c0_3] : memref<48x128xbf16, #tpu.memory_space<vmem>>, vector<48x128xbf16>
    %c0_4 = arith.constant 0 : index
    %c0_5 = arith.constant 0 : index
    %5 = vector.load %arg6[%c0_4, %c0_5] : memref<32x9xbf16, #tpu.memory_space<vmem>>, vector<32x9xbf16>
    %cst = arith.constant 0.000000e+00 : f32
    %6 = vector.broadcast %cst : f32 to vector<16x55xf32>
    %c0_6 = arith.constant 0 : index
    %c0_7 = arith.constant 0 : index
    %c0_8 = arith.constant 0 : index
    %7 = vector.load %arg1[%c0_6, %c0_7, %c0_8] : memref<1x16x9xf32, #tpu.memory_space<vmem>>, vector<1x16x9xf32>
    %8 = vector.shape_cast %7 : vector<1x16x9xf32> to vector<16x9xf32>
    %cst_9 = arith.constant dense<0.000000e+00> : vector<16x16xf32>
    %9 = tpu.matmul %8, %3, %cst_9 {dimension_numbers = #tpu.dot_dimension_numbers<[1], [0], [0], [1], [0, 0, 1, 1], [], []>} : vector<16x9xf32>, vector<9x16xf32>, vector<16x16xf32> -> vector<16x16xf32>
    %10 = math.tanh %9 : vector<16x16xf32>
    %c0_10 = arith.constant 0 : index
    %c0_11 = arith.constant 0 : index
    %11 = vector.load %arg8[%c0_10, %c0_11] : memref<16x48xf32, #tpu.memory_space<vmem>>, vector<16x16xf32>
    tpu.vector_store %arg8[%c0_10, %c0_11], %10 {strides = array<i32>} : memref<16x48xf32, #tpu.memory_space<vmem>>, vector<16x16xf32>,
    %c0_12 = arith.constant 0 : index
    %c0_13 = arith.constant 0 : index
    %12 = vector.load %arg9[%c0_12, %c0_13] : memref<16x32xf32, #tpu.memory_space<vmem>>, vector<16x32xf32>
    %c0_14 = arith.constant 0 : index
    %c0_15 = arith.constant 0 : index
    %13 = vector.load %arg8[%c0_14, %c0_15] : memref<16x48xf32, #tpu.memory_space<vmem>>, vector<16x48xf32>
    %14 = arith.truncf %13 : vector<16x48xf32> to vector<16x48xbf16>
    %cst_16 = arith.constant dense<0.000000e+00> : vector<16x128xf32>
    %15 = tpu.matmul %14, %4, %cst_16 {dimension_numbers = #tpu.dot_dimension_numbers<[1], [0], [0], [1], [0, 0, 1, 1], [], []>} : vector<16x48xbf16>, vector<48x128xbf16>, vector<16x128xf32> -> vector<16x128xf32>
    %16 = vector.extract_strided_slice %15 {offsets = [0, 0], sizes = [16, 96], strides = [1, 1]} : vector<16x128xf32> to vector<16x96xf32>
    %17 = arith.negf %16 : vector<16x96xf32>
    %18 = math.exp %17 : vector<16x96xf32>
    %cst_17 = arith.constant 1.000000e+00 : f32
    %19 = vector.broadcast %cst_17 : f32 to vector<16x96xf32>
    %20 = arith.addf %19, %18 : vector<16x96xf32>
    %21 = arith.divf %19, %20 : vector<16x96xf32>
    %22 = vector.extract_strided_slice %15 {offsets = [0, 96], sizes = [16, 32], strides = [1, 1]} : vector<16x128xf32> to vector<16x32xf32>
    %23 = math.tanh %22 : vector<16x32xf32>
    %24 = vector.extract_strided_slice %21 {offsets = [0, 0], sizes = [16, 32], strides = [1, 1]} : vector<16x96xf32> to vector<16x32xf32>
    %25 = vector.extract_strided_slice %21 {offsets = [0, 32], sizes = [16, 32], strides = [1, 1]} : vector<16x96xf32> to vector<16x32xf32>
    %26 = vector.extract_strided_slice %21 {offsets = [0, 64], sizes = [16, 32], strides = [1, 1]} : vector<16x96xf32> to vector<16x32xf32>
    %27 = arith.mulf %25, %12 : vector<16x32xf32>
    %28 = arith.mulf %24, %23 : vector<16x32xf32>
    %29 = arith.addf %27, %28 : vector<16x32xf32>
    %30 = math.tanh %29 : vector<16x32xf32>
    %31 = arith.mulf %26, %30 : vector<16x32xf32>
    %32 = arith.truncf %31 : vector<16x32xf32> to vector<16x32xbf16>
    %cst_18 = arith.constant dense<0.000000e+00> : vector<16x9xf32>
    %33 = tpu.matmul %32, %5, %cst_18 {dimension_numbers = #tpu.dot_dimension_numbers<[1], [0], [0], [1], [0, 0, 1, 1], [], []>} : vector<16x32xbf16>, vector<32x9xbf16>, vector<16x9xf32> -> vector<16x9xf32>
    %34 = math.tanh %33 : vector<16x9xf32>
    %c0_19 = arith.constant 0 : index
    %c16 = arith.constant 16 : index
    %35 = vector.load %arg8[%c0_19, %c16] : memref<16x48xf32, #tpu.memory_space<vmem>>, vector<16x32xf32>
    tpu.vector_store %arg8[%c0_19, %c16], %31 {strides = array<i32>} : memref<16x48xf32, #tpu.memory_space<vmem>>, vector<16x32xf32>,
    %c0_20 = arith.constant 0 : index
    %c0_21 = arith.constant 0 : index
    %36 = vector.load %arg9[%c0_20, %c0_21] : memref<16x32xf32, #tpu.memory_space<vmem>>, vector<16x32xf32>
    tpu.vector_store %arg9[%c0_20, %c0_21], %29 {strides = array<i32>} : memref<16x32xf32, #tpu.memory_space<vmem>>, vector<16x32xf32>,
    %c0_22 = arith.constant 0 : index
    %c0_23 = arith.constant 0 : index
    %c0_24 = arith.constant 0 : index
    %37 = vector.load %arg7[%c0_22, %c0_23, %c0_24] : memref<1x16x128xf32, #tpu.memory_space<vmem>>, vector<1x16x9xf32>
    %38 = vector.shape_cast %37 : vector<1x16x9xf32> to vector<16x9xf32>
    %39 = vector.shape_cast %34 : vector<16x9xf32> to vector<1x16x9xf32>
    tpu.vector_store %arg7[%c0_22, %c0_23, %c0_24], %39 {strides = array<i32>} : memref<1x16x128xf32, #tpu.memory_space<vmem>>, vector<1x16x9xf32>,
    %c0_25 = arith.constant 0 : index
    %c0_26 = arith.constant 0 : index
    %c9 = arith.constant 9 : index
    %40 = vector.load %arg7[%c0_25, %c0_26, %c9] : memref<1x16x128xf32, #tpu.memory_space<vmem>>, vector<1x16x32xf32>
    %41 = vector.shape_cast %40 : vector<1x16x32xf32> to vector<16x32xf32>
    %42 = vector.shape_cast %31 : vector<16x32xf32> to vector<1x16x32xf32>
    tpu.vector_store %arg7[%c0_25, %c0_26, %c9], %42 {strides = array<i32>} : memref<1x16x128xf32, #tpu.memory_space<vmem>>, vector<1x16x32xf32>,
    %c0_27 = arith.constant 0 : index
    %c0_28 = arith.constant 0 : index
    %c41 = arith.constant 41 : index
    %43 = vector.load %arg7[%c0_27, %c0_28, %c41] : memref<1x16x128xf32, #tpu.memory_space<vmem>>, vector<1x16x32xf32>
    %44 = vector.shape_cast %43 : vector<1x16x32xf32> to vector<16x32xf32>
    %45 = vector.shape_cast %29 : vector<16x32xf32> to vector<1x16x32xf32>
    tpu.vector_store %arg7[%c0_27, %c0_28, %c41], %45 {strides = array<i32>} : memref<1x16x128xf32, #tpu.memory_space<vmem>>, vector<1x16x32xf32>,
    %c0_29 = arith.constant 0 : index
    %c0_30 = arith.constant 0 : index
    %c73 = arith.constant 73 : index
    %46 = vector.load %arg7[%c0_29, %c0_30, %c73] : memref<1x16x128xf32, #tpu.memory_space<vmem>>, vector<1x16x55xf32>
    %47 = vector.shape_cast %46 : vector<1x16x55xf32> to vector<16x55xf32>
    %48 = vector.shape_cast %6 : vector<16x55xf32> to vector<1x16x55xf32>
    tpu.vector_store %arg7[%c0_29, %c0_30, %c73], %48 {strides = array<i32>} : memref<1x16x128xf32, #tpu.memory_space<vmem>>, vector<1x16x55xf32>,
    return
  }
  func.func @transform_0(%arg0: i32) -> (i32, i32, i32) {
    %c0_i32 = arith.constant 0 : i32
    %c0_i32_0 = arith.constant 0 : i32
    %c0_i32_1 = arith.constant 0 : i32
    return %arg0, %c0_i32, %c0_i32_0 : i32, i32, i32
  }
  func.func @transform_1(%arg0: i32) -> (i32, i32) {
    %c0_i32 = arith.constant 0 : i32
    %c0_i32_0 = arith.constant 0 : i32
    %c0_i32_1 = arith.constant 0 : i32
    return %c0_i32, %c0_i32_0 : i32, i32
  }
  func.func @transform_2(%arg0: i32) -> (i32, i32) {
    %c0_i32 = arith.constant 0 : i32
    %c0_i32_0 = arith.constant 0 : i32
    %c0_i32_1 = arith.constant 0 : i32
    return %c0_i32, %c0_i32_0 : i32, i32
  }
  func.func @transform_3(%arg0: i32) -> (i32, i32) {
    %c0_i32 = arith.constant 0 : i32
    %c0_i32_0 = arith.constant 0 : i32
    %c0_i32_1 = arith.constant 0 : i32
    return %c0_i32, %c0_i32_0 : i32, i32
  }
  func.func @transform_4(%arg0: i32) -> (i32, i32) {
    %c0_i32 = arith.constant 0 : i32
    %c0_i32_0 = arith.constant 0 : i32
    %c0_i32_1 = arith.constant 0 : i32
    return %c0_i32, %c0_i32_0 : i32, i32
  }
  func.func @transform_5(%arg0: i32) -> (i32, i32) {
    %c0_i32 = arith.constant 0 : i32
    %c0_i32_0 = arith.constant 0 : i32
    %c0_i32_1 = arith.constant 0 : i32
    return %c0_i32, %c0_i32_0 : i32, i32
  }
  func.func @transform_6(%arg0: i32) -> (i32, i32, i32) {
    %c0_i32 = arith.constant 0 : i32
    %c0_i32_0 = arith.constant 0 : i32
    %c0_i32_1 = arith.constant 0 : i32
    return %arg0, %c0_i32, %c0_i32_0 : i32, i32, i32
  }
}

</mosaic_0001>

<llo_original>
// kernel: tpu_custom_call.1
$region0: #{tpu_custom_call.1}
  #allocation0 [shape = 'u32[]', space=smem, size = 0x4, offset = 0x4, fixed_abs, tag = 'smem constant byte address 0x4 - core index']
  #allocation1 [shape = 'u32[144,128]{1,0:T(1,128)}', space=vmem, size = 0x12000, scoped, tag = 'internal scratch']
  #allocation2 [shape = 'f32[16,48]{1,0:T(8,128)}', space=vmem, size = 0x2000, scoped, tag = 'scratch operand']
  #allocation3 [shape = 'f32[16,32]{1,0:T(8,128)}', space=vmem, size = 0x2000, scoped, tag = 'scratch operand']
  %s0 = inlined_call_operand.vmem [shape: f32[1,16,9], index: 0, kind: input, shape index: {}]
  %s1 = inlined_call_operand.vmem [shape: f32[16,32], index: 1, kind: input, shape index: {}]
  %s2 = inlined_call_operand.vmem [shape: f32[16,32], index: 2, kind: input, shape index: {}]
  %s3 = inlined_call_operand.hbm [shape: f32[9,16], index: 3, kind: input, shape index: {}]
  %s4 = inlined_call_operand.vmem [shape: bf16[48,128], index: 4, kind: input, shape index: {}]
  %s5 = inlined_call_operand.vmem [shape: bf16[32,9], index: 5, kind: input, shape index: {}]
  %s6 = inlined_call_operand.hbm [shape: f32[1,16,128], index: 6, kind: output, shape index: {}]
  %s7 = sld [smem:[#allocation0]]
  $region42: #{tpu_custom_call.1} parent=0
    _
  %s9 = ssub.s32 1, %s7
  %s10 = scalar_select 0, %s9, %s7
  $region1: #{tpu_custom_call.1} parent=0
    #allocation4 [shape = 'u8[8192]{0}', space=vmem, size = 0x2000, scoped, tag = 'input window, operand 3, single buffered']
    #allocation5 [shape = 's32[1]{0}', space=sflag, size = 0x4, scoped, tag = 'scoped memory for tpu_custom_call.1']
    #allocation6 [shape = 's32[1]{0}', space=sflag, size = 0x4, scoped, tag = 'scoped memory for tpu_custom_call.1']
    #allocation7 [shape = 'u8[8192]{0}', space=vmem, size = 0x2000, scoped, tag = 'output window, operand 0, single buffered']
    %11 = vsyncpa [#allocation5], 0
    %12 = vsyncpa [#allocation6], 0
    // Predicated region
    $region2: #{tpu_custom_call.1} parent=1 // pred_check
      _
    $region3: #{tpu_custom_call.1} parent=1 // pred_check_branch
      %14 = sbr.rel (0) target = $region5
    $region4: #{tpu_custom_call.1} parent=1 // pred_region
      _
    $region5: #{tpu_custom_call.1} parent=1 // pred_fallthru
      _
    // Predicated region
    $region6: #{tpu_custom_call.1} parent=1 // pred_check
      _
    $region7: #{tpu_custom_call.1} parent=1 // pred_check_branch
      %16 = sbr.rel (0) target = $region9
    $region8: #{tpu_custom_call.1} parent=1 // pred_region
      _
    $region9: #{tpu_custom_call.1} parent=1 // pred_fallthru
      _
    // Predicated region
    $region10: #{tpu_custom_call.1} parent=1 // pred_check
      _
    $region11: #{tpu_custom_call.1} parent=1 // pred_check_branch
      %18 = sbr.rel (0) target = $region13
    $region12: #{tpu_custom_call.1} parent=1 // pred_region
      _
    $region13: #{tpu_custom_call.1} parent=1 // pred_fallthru
      _
    // Predicated region
    $region14: #{tpu_custom_call.1} parent=1 // pred_check
      _
    $region15: #{tpu_custom_call.1} parent=1 // pred_check_branch
      %20 = sbr.rel (0) target = $region17
    $region16: #{tpu_custom_call.1} parent=1 // pred_region
      %s22 = ssub.s32 256, 256
      %23 = vsyncadd [#allocation5], %s22
      %s24 = sshll.u32 [#allocation4], 4
      %s25 = int_to_ptr.vmem [resolvable:$true] %s24
      %30 = dma.hbm_to_vmem [thread:$0]  %s3, 256, %s25, [#allocation5], 128, 128, 8
    $region17: #{tpu_custom_call.1} parent=1 // pred_fallthru
      _
    // Predicated region
    $region18: #{tpu_custom_call.1} parent=1 // pred_check
      _
    $region19: #{tpu_custom_call.1} parent=1 // pred_check_branch
      %32 = sbr.rel (0) target = $region21
    $region20: #{tpu_custom_call.1} parent=1 // pred_region
      _
    $region21: #{tpu_custom_call.1} parent=1 // pred_fallthru
      _
    // Predicated region
    $region22: #{tpu_custom_call.1} parent=1 // pred_check
      _
    $region23: #{tpu_custom_call.1} parent=1 // pred_check_branch
      %34 = sbr.rel (0) target = $region25
    $region24: #{tpu_custom_call.1} parent=1 // pred_region
      _
    $region25: #{tpu_custom_call.1} parent=1 // pred_fallthru
      _
    // Predicated region
    $region26: #{tpu_custom_call.1} parent=1 // pred_check
      _
    $region27: #{tpu_custom_call.1} parent=1 // pred_check_branch
      %36 = sbr.rel (0) target = $region29
    $region28: #{tpu_custom_call.1} parent=1 // pred_region
      %37 = dma.done [#allocation5], 256
    $region29: #{tpu_custom_call.1} parent=1 // pred_fallthru
      _
    %p39 = scmp.eq.s32.totalorder 0, 0
    // Predicated region
    $region30: #{tpu_custom_call.1} parent=1 // pred_check
      %p40 = pneg %p39
    $region31: #{tpu_custom_call.1} parent=1 // pred_check_branch
      %42 = sbr.rel (%p40) target = $region33
    $region32: #{tpu_custom_call.1} parent=1 // pred_region
      %v43 = vld [vmem:[%s1] sm:$0xff]
      %v44 = vld [vmem:[%s1 + $0x8] sm:$0xff]
      %47 = vrot.lane.b32.xlu0 %v43, 16
      %v48 = vpop.permute.xlu0 %47
      %49 = vrot.lane.b32.xlu0 %v44, 16
      %v50 = vpop.permute.xlu0 %49
      %vm53 = vcmask 392320
      %54 = vst.msk [vmem:[#allocation2] sm:$0xff] %vm53, %v48
      %55 = vst.msk [vmem:[#allocation2 + $0x8] sm:$0xff] %vm53, %v50
      %v56 = vld [vmem:[%s2] sm:$0xff]
      %v57 = vld [vmem:[%s2 + $0x8] sm:$0xff]
      %vm58 = vcmask 261120
      %59 = vst.msk [vmem:[#allocation3] sm:$0xff] %vm58, %v56
      %60 = vst.msk [vmem:[#allocation3 + $0x8] sm:$0xff] %vm58, %v57
    $region33: #{tpu_custom_call.1} parent=1 // pred_fallthru
      _
    %v61 = vld [vmem:[#allocation4] sm:$0xff]
    %v62 = vld [vmem:[#allocation4 + $0x8] sm:$0x1]
    %v63 = vld [vmem:[%s4] sm:$0xf]
    %v64 = vld [vmem:[%s4 + $0x4] sm:$0xf]
    %v65 = vld [vmem:[%s4 + $0x8] sm:$0xf]
    %v66 = vld [vmem:[%s4 + $0xc] sm:$0xf]
    %v67 = vld [vmem:[%s4 + $0x10] sm:$0xf]
    %v68 = vld [vmem:[%s4 + $0x14] sm:$0xf]
    %v69 = vld [vmem:[%s5] sm:$0xf]
    %v70 = vld [vmem:[%s5 + $0x4] sm:$0xf]
    %v71 = vld [vmem:[%s5 + $0x8] sm:$0xf]
    %v72 = vld [vmem:[%s5 + $0xc] sm:$0xf]
    %v73 = vld [vmem:[%s0] sm:$0xff]
    %v74 = vld [vmem:[%s0 + $0x8] sm:$0xff]
    %vm75 = vcmask 72704
    %v77 = vsel %vm75, %v73, 0
    %v80 = vsel %vm75, %v74, 0
    %vm82 = vcmask 1040384
    %v84 = vsel %vm82, %v62, 0
    %86 = vmatprep.subr.mxu0 0.0
    %87 = vmatpush1.msra.mxu0 %v61
    %88 = vmatprep.subr.mxu0 0.0
    %89 = vmatpush1.msra.mxu0 %v84
    %90 = vmatprep.subr.mxu0 0.0
    %91 = vmatpush1.msra.mxu0 0.0
    %92 = vmatprep.subr.mxu0 0.0
    %93 = vmatpush1.msra.mxu0 0.0
    %94 = vmatprep.subr.mxu0 0.0
    %95 = vmatpush1.msra.mxu0 0.0
    %96 = vmatprep.subr.mxu0 0.0
    %97 = vmatpush1.msra.mxu0 0.0
    %98 = vmatprep.subr.mxu0 0.0
    %99 = vmatpush1.msra.mxu0 0.0
    %100 = vmatprep.subr.mxu0 0.0
    %101 = vmatpush1.msra.mxu0 0.0
    %102 = vmatprep.subr.mxu0 0.0
    %103 = vmatpush1.msra.mxu0 0.0
    %104 = vmatprep.subr.mxu0 0.0
    %105 = vmatpush1.msra.mxu0 0.0
    %106 = vmatprep.subr.mxu0 0.0
    %107 = vmatpush1.msra.mxu0 0.0
    %108 = vmatprep.subr.mxu0 0.0
    %109 = vmatpush1.msra.mxu0 0.0
    %110 = vmatprep.subr.mxu0 0.0
    %111 = vmatpush1.msra.mxu0 0.0
    %112 = vmatprep.subr.mxu0 0.0
    %113 = vmatpush1.msra.mxu0 0.0
    %114 = vmatprep.subr.mxu0 0.0
    %115 = vmatpush1.msra.mxu0 0.0
    %116 = vmatprep.subr.mxu0 0.0
    %117 = vmatpush1.msra.mxu0 0.0
    %118 = vmatprep.subr.mxu0 0.0
    %119 = vmatpush1.msra.mxu0 0.0
    %120 = vmatprep.subr.mxu0 0.0
    %121 = vmatpush1.msra.mxu0 0.0
    %122 = vmatprep.subr.mxu0 0.0
    %123 = vmatpush1.msra.mxu0 0.0
    %124 = vmatprep.subr.mxu0 0.0
    %125 = vmatpush1.msra.mxu0 0.0
    %126 = vmatprep.subr.mxu0 0.0
    %127 = vmatpush1.msra.mxu0 0.0
    %128 = vmatprep.subr.mxu0 0.0
    %129 = vmatpush1.msra.mxu0 0.0
    %130 = vmatprep.subr.mxu0 0.0
    %131 = vmatpush1.msra.mxu0 0.0
    %132 = vmatprep.subr.mxu0 0.0
    %133 = vmatpush1.msra.mxu0 0.0
    %134 = vmatprep.subr.mxu0 0.0
    %135 = vmatpush1.msra.mxu0 0.0
    %136 = vmatprep.subr.mxu0 0.0
    %137 = vmatpush1.msra.mxu0 0.0
    %138 = vmatprep.subr.mxu0 0.0
    %139 = vmatpush1.msra.mxu0 0.0
    %140 = vmatprep.subr.mxu0 0.0
    %141 = vmatpush1.msra.mxu0 0.0
    %142 = vmatprep.subr.mxu0 0.0
    %143 = vmatpush1.msra.mxu0 0.0
    %144 = vmatprep.subr.mxu0 0.0
    %145 = vmatpush1.msra.mxu0 0.0
    %146 = vmatprep.subr.mxu0 0.0
    %147 = vmatpush1.msra.mxu0 0.0
    %148 = vmatprep.subr.mxu0 0.0
    %149 = vmatpush1.msra.mxu0 0.0
    %150 = vmatprep.mubr.f32.mxu0 0.0
    %151 = vmatmul.mubr.f32.gmra.mrb[0].mxu0 %v77
    %v152 = vpop.f32.mrb[0].mxu0
    %v153 = vadd.f32 0.0, %v152
    %v154 = vpop.f32.mrb[0].mxu0
    %155 = vmatprep.mubr.f32.mxu0 0.0
    %156 = vmatmul.mubr.f32.gmra.mrb[0].mxu0 %v80
    %v157 = vpop.f32.mrb[0].mxu0
    %v158 = vadd.f32 0.0, %v157
    %v159 = vpop.f32.mrb[0].mxu0
    %160 = vdwg.mxu0
    %v161 = vtanh.pop %v153
    %v162 = vtanh.pop %v158
    %vm163 = vcmask 130048
    %164 = vst.msk [vmem:[#allocation2] sm:$0xff] %vm163, %v161
    %165 = vst.msk [vmem:[#allocation2 + $0x8] sm:$0xff] %vm163, %v162
    %v166 = vld [vmem:[#allocation3] sm:$0xff]
    %v167 = vld [vmem:[#allocation3 + $0x8] sm:$0xff]
    %v168 = vld [vmem:[#allocation2] sm:$0xff]
    %v169 = vld [vmem:[#allocation2 + $0x8] sm:$0xff]
    %v170 = vpack.c.bf16 %v169, %v168
    %v177 = vunpack.c.l.b16 %v63
    %v178 = vunpack.c.l.b16 %v64
    %v179 = vunpack.c.l.b16 %v65
    %v180 = vunpack.c.l.b16 %v66
    %v181 = vunpack.c.l.b16 %v67
    %v182 = vunpack.c.l.b16 %v68
    %v183 = vpack.c.b16 %v178, %v177
    %v184 = vpack.c.b16 %v180, %v179
    %v185 = vpack.c.b16 %v182, %v181
    %vm189 = vcmask 392192
    %v191 = vsel %vm189, %v170, 0
    %193 = vmatprep.subr.bf16.mxu0 0
    %194 = vmatpush1.bf16.msra.mxu0 %v183
    %195 = vmatprep.subr.bf16.mxu0 0
    %196 = vmatpush1.bf16.msra.mxu0 %v184
    %197 = vmatprep.subr.bf16.mxu0 0
    %198 = vmatpush1.bf16.msra.mxu0 %v185
    %199 = vmatprep.subr.bf16.mxu0 0
    %200 = vmatpush1.bf16.msra.mxu0 0
    %201 = vmatprep.subr.bf16.mxu0 0
    %202 = vmatpush1.bf16.msra.mxu0 0
    %203 = vmatprep.subr.bf16.mxu0 0
    %204 = vmatpush1.bf16.msra.mxu0 0
    %205 = vmatprep.subr.bf16.mxu0 0
    %206 = vmatpush1.bf16.msra.mxu0 0
    %207 = vmatprep.subr.bf16.mxu0 0
    %208 = vmatpush1.bf16.msra.mxu0 0
    %209 = vmatprep.subr.bf16.mxu0 0
    %210 = vmatpush1.bf16.msra.mxu0 0
    %211 = vmatprep.subr.bf16.mxu0 0
    %212 = vmatpush1.bf16.msra.mxu0 0
    %213 = vmatprep.subr.bf16.mxu0 0
    %214 = vmatpush1.bf16.msra.mxu0 0
    %215 = vmatprep.subr.bf16.mxu0 0
    %216 = vmatpush1.bf16.msra.mxu0 0
    %217 = vmatprep.subr.bf16.mxu0 0
    %218 = vmatpush1.bf16.msra.mxu0 0
    %219 = vmatprep.subr.bf16.mxu0 0
    %220 = vmatpush1.bf16.msra.mxu0 0
    %221 = vmatprep.subr.bf16.mxu0 0
    %222 = vmatpush1.bf16.msra.mxu0 0
    %223 = vmatprep.subr.bf16.mxu0 0
    %224 = vmatpush1.bf16.msra.mxu0 0
    %225 = vmatprep.mubr.bf16.mxu0 0
    %226 = vmatmul.mubr.bf16.gmra.mrb[0].mxu0 %v191
    %v227 = vpop.f32.mrb[0].mxu0
    %v228 = vadd.f32 0.0, %v227
    %v229 = vpop.f32.mrb[0].mxu0
    %v230 = vpop.f32.mrb[0].mxu0
    %v231 = vadd.f32 0.0, %v230
    %v232 = vpop.f32.mrb[0].mxu0
    %233 = vdwg.mxu0
    %v234 = vxor.u32 %v228, 2147483648
    %v235 = vxor.u32 %v231, 2147483648
    %v236 = vmul.f32 %v234, 1.442695
    %v237 = vpow.pop %v236
    %v238 = vmul.f32 %v235, 1.442695
    %v239 = vpow.pop %v238
    %v240 = vadd.f32 %v237, 1.0
    %v241 = vadd.f32 %v239, 1.0
    %v242 = vrcp.pop %v240
    %v243 = vmul.f32 1.0, %v242
    %v244 = vrcp.pop %v241
    %v245 = vmul.f32 1.0, %v244
    %v246 = vtanh.pop %v228
    %v247 = vtanh.pop %v231
    %250 = vrot.lane.b32.xlu0 %v166, 32
    %v251 = vpop.permute.xlu0 %250
    %252 = vrot.lane.b32.xlu0 %v167, 32
    %v253 = vpop.permute.xlu0 %252
    %v256 = vmul.f32 %v243, %v251
    %v257 = vmul.f32 %v245, %v253
    %260 = vrot.lane.b32.xlu0 %v246, 32
    %v261 = vpop.permute.xlu0 %260
    %262 = vrot.lane.b32.xlu0 %v247, 32
    %v263 = vpop.permute.xlu0 %262
    %v266 = vmul.f32 %v243, %v261
    %v267 = vmul.f32 %v245, %v263
    %270 = vrot.lane.b32.xlu0 %v266, 32
    %v271 = vpop.permute.xlu0 %270
    %272 = vrot.lane.b32.xlu0 %v267, 32
    %v273 = vpop.permute.xlu0 %272
    %v276 = vadd.f32 %v256, %v271
    %v277 = vadd.f32 %v257, %v273
    %v278 = vtanh.pop %v276
    %v279 = vtanh.pop %v277
    %282 = vrot.lane.b32.xlu0 %v278, 32
    %v283 = vpop.permute.xlu0 %282
    %284 = vrot.lane.b32.xlu0 %v279, 32
    %v285 = vpop.permute.xlu0 %284
    %v288 = vmul.f32 %v243, %v283
    %v289 = vmul.f32 %v245, %v285
    %v290 = vpack.c.bf16 %v289, %v288
    %292 = vrot.lane.b32.xlu0 %v290, 64
    %v293 = vpop.permute.xlu0 %292
    %v298 = vunpack.c.l.b16 %v69
    %v299 = vunpack.c.l.b16 %v70
    %v300 = vunpack.c.l.b16 %v71
    %v301 = vunpack.c.l.b16 %v72
    %v302 = vpack.c.b16 %v299, %v298
    %v303 = vpack.c.b16 %v301, %v300
    %vm306 = vcmask 261120
    %v308 = vsel %vm306, %v293, 0
    %310 = vmatprep.subr.bf16.mxu0 0
    %311 = vmatpush1.bf16.msra.mxu0 %v302
    %312 = vmatprep.subr.bf16.mxu0 0
    %313 = vmatpush1.bf16.msra.mxu0 %v303
    %314 = vmatprep.subr.bf16.mxu0 0
    %315 = vmatpush1.bf16.msra.mxu0 0
    %316 = vmatprep.subr.bf16.mxu0 0
    %317 = vmatpush1.bf16.msra.mxu0 0
    %318 = vmatprep.subr.bf16.mxu0 0
    %319 = vmatpush1.bf16.msra.mxu0 0
    %320 = vmatprep.subr.bf16.mxu0 0
    %321 = vmatpush1.bf16.msra.mxu0 0
    %322 = vmatprep.subr.bf16.mxu0 0
    %323 = vmatpush1.bf16.msra.mxu0 0
    %324 = vmatprep.subr.bf16.mxu0 0
    %325 = vmatpush1.bf16.msra.mxu0 0
    %326 = vmatprep.subr.bf16.mxu0 0
    %327 = vmatpush1.bf16.msra.mxu0 0
    %328 = vmatprep.subr.bf16.mxu0 0
    %329 = vmatpush1.bf16.msra.mxu0 0
    %330 = vmatprep.subr.bf16.mxu0 0
    %331 = vmatpush1.bf16.msra.mxu0 0
    %332 = vmatprep.subr.bf16.mxu0 0
    %333 = vmatpush1.bf16.msra.mxu0 0
    %334 = vmatprep.subr.bf16.mxu0 0
    %335 = vmatpush1.bf16.msra.mxu0 0
    %336 = vmatprep.subr.bf16.mxu0 0
    %337 = vmatpush1.bf16.msra.mxu0 0
    %338 = vmatprep.subr.bf16.mxu0 0
    %339 = vmatpush1.bf16.msra.mxu0 0
    %340 = vmatprep.subr.bf16.mxu0 0
    %341 = vmatpush1.bf16.msra.mxu0 0
    %342 = vmatprep.mubr.bf16.mxu0 0
    %343 = vmatmul.mubr.bf16.gmra.mrb[0].mxu0 %v308
    %v344 = vpop.f32.mrb[0].mxu0
    %v345 = vadd.f32 0.0, %v344
    %v346 = vpop.f32.mrb[0].mxu0
    %v347 = vpop.f32.mrb[0].mxu0
    %v348 = vadd.f32 0.0, %v347
    %v349 = vpop.f32.mrb[0].mxu0
    %350 = vdwg.mxu0
    %v351 = vtanh.pop %v345
    %v352 = vtanh.pop %v348
    %355 = vrot.lane.b32.xlu0 %v288, 80
    %v356 = vpop.permute.xlu0 %355
    %357 = vrot.lane.b32.xlu0 %v289, 80
    %v358 = vpop.permute.xlu0 %357
    %vm361 = vcmask 392320
    %362 = vst.msk [vmem:[#allocation2] sm:$0xff] %vm361, %v356
    %363 = vst.msk [vmem:[#allocation2 + $0x8] sm:$0xff] %vm361, %v358
    %366 = vrot.lane.b32.xlu0 %v276, 96
    %v367 = vpop.permute.xlu0 %366
    %368 = vrot.lane.b32.xlu0 %v277, 96
    %v369 = vpop.permute.xlu0 %368
    %372 = vst.msk [vmem:[#allocation3] sm:$0xff] %vm306, %v367
    %373 = vst.msk [vmem:[#allocation3 + $0x8] sm:$0xff] %vm306, %v369
    %374 = vst.msk [vmem:[#allocation7] sm:$0xff] %vm75, %v351
    %375 = vst.msk [vmem:[#allocation7 + $0x8] sm:$0xff] %vm75, %v352
    %376 = vrot.lane.b32.xlu0 %v288, 73
    %v377 = vpop.permute.xlu0 %376
    %378 = vrot.lane.b32.xlu0 %v289, 73
    %v379 = vpop.permute.xlu0 %378
    %vm382 = vcmask 334920
    %383 = vst.msk [vmem:[#allocation7] sm:$0xff] %vm382, %v377
    %384 = vst.msk [vmem:[#allocation7 + $0x8] sm:$0xff] %vm382, %v379
    %385 = vrot.lane.b32.xlu0 %v276, 9
    %v386 = vpop.permute.xlu0 %385
    %387 = vrot.lane.b32.xlu0 %v277, 9
    %v388 = vpop.permute.xlu0 %387
    %vm391 = vcmask 597320
    %392 = vst.msk [vmem:[#allocation7] sm:$0xff] %vm391, %v386
    %393 = vst.msk [vmem:[#allocation7 + $0x8] sm:$0xff] %vm391, %v388
    %vm394 = vcmask 1048136
    %395 = vst.msk [vmem:[#allocation7] sm:$0xff] %vm394, 0.0
    %396 = vst.msk [vmem:[#allocation7 + $0x8] sm:$0xff] %vm394, 0.0
    // Predicated region
    $region34: #{tpu_custom_call.1} parent=1 // pred_check
      _
    $region35: #{tpu_custom_call.1} parent=1 // pred_check_branch
      %398 = sbr.rel (0) target = $region37
    $region36: #{tpu_custom_call.1} parent=1 // pred_region
      %s400 = ssub.s32 256, 256
      %401 = vsyncadd [#allocation6], %s400
      %s402 = sshll.u32 [#allocation7], 4
      %s403 = int_to_ptr.vmem [resolvable:$true] %s402
      %408 = dma.vmem_to_hbm [thread:$0]  %s403, 256, %s6, [#allocation6], 128, 128, 8
    $region37: #{tpu_custom_call.1} parent=1 // pred_fallthru
      _
    // Predicated region
    $region38: #{tpu_custom_call.1} parent=1 // pred_check
      _
    $region39: #{tpu_custom_call.1} parent=1 // pred_check_branch
      %410 = sbr.rel (0) target = $region41
    $region40: #{tpu_custom_call.1} parent=1 // pred_region
      %411 = dma.done [#allocation6], 256
    $region41: #{tpu_custom_call.1} parent=1 // pred_fallthru
      _
    %412 = vsyncpa [#allocation5], 1
    %413 = vsyncpa [#allocation6], 1

</llo_original>
